<compile_context>
chip_gen: v7x
topology: tpu7x:2x2x1
jax: 0.10.0
libtpu: 0.0.40
codegen_flags: <defaults>
</compile_context>

<pallas_src>
import functools

import jax
import jax.numpy as jnp
from jax.experimental import pallas as pl
from jax.experimental.pallas import tpu as pltpu


def _round_up(n, m):
    return ((n + m - 1) // m) * m


def _sublane_multiple(dtype):
    return {4: 8, 2: 16, 1: 32}.get(jnp.dtype(dtype).itemsize, 8)


def _vmem_capacity_bytes():
    """Per-TensorCore VMEM capacity; conservative fallback if unqueryable."""
    try:
        info = pltpu.get_tpu_info()
        cap = getattr(info, "vmem_capacity_bytes", None)
        if cap:
            return int(cap)
    except Exception:
        pass
    return 64 << 20  # v7x per-TC size: safe lower bound


def _pick_feature_tile(d128, tmax):
    """d128 is a multiple of 128. Returns (tile, padded_dim) with tile | padded_dim."""
    if d128 <= tmax:
        return d128, d128
    # Largest 128-multiple divisor of d128 that fits in tmax -> no feature padding.
    best = 128
    t = (tmax // 128) * 128
    while t >= 128:
        if d128 % t == 0:
            best = t
            break
        t -= 128
    if 2 * best >= tmax:
        return best, d128
    # Divisor too small to keep arithmetic intensity up -> pad instead.
    return tmax, _round_up(d128, tmax)


def _xcov_kernel(x_ref, y_ref, sx_ref, sy_ref, o_ref, acc_ref, *, inv_b):
    # grid = (i: Dx tile [parallel], j: Dy tile [parallel], k: B tile [reduction]).
    k = pl.program_id(2)
    last_k = pl.num_programs(2) - 1

    @pl.when(k == 0)
    def _init():
        acc_ref[...] = jnp.zeros_like(acc_ref)

    # MXU: contract over the batch axis; operands stay in their native dtype,
    # accumulation is f32 via preferred_element_type.
    acc_ref[...] += jax.lax.dot_general(
        x_ref[...], y_ref[...],
        dimension_numbers=(((0,), (0,)), ((), ())),
        preferred_element_type=jnp.float32,
    )

    # End of the B sweep for this (i, j) tile: apply the mean correction
    # algebraically and emit this tile's Frobenius contribution.
    @pl.when(k == last_k)
    def _finish():
        a = acc_ref[...]          # (tdx, tdy) = X^T Y tile, f32
        sx = sx_ref[...]          # (1, tdx)  column sums of x (f32, precomputed)
        sy = sy_ref[...]          # (1, tdy)  column sums of y (f32, precomputed)
        # sum(C^2) with C = A - inv_b * sx^T sy, expanded so the rank-1
        # correction tile is never materialized:
        sum_aa = jnp.sum(a * a, axis=(0, 1), keepdims=True)            # (1, 1)
        t = jnp.dot(sx, a, preferred_element_type=jnp.float32)         # (1, tdy)
        cross = jnp.sum(t * sy, axis=(0, 1), keepdims=True)            # (1, 1)
        sxx = jnp.sum(sx * sx, axis=(0, 1), keepdims=True)             # (1, 1)
        syy = jnp.sum(sy * sy, axis=(0, 1), keepdims=True)             # (1, 1)
        val = sum_aa - (2.0 * inv_b) * cross + (inv_b * inv_b) * (sxx * syy)
        o_ref[...] = jnp.broadcast_to(val, o_ref.shape)                # (1, 128)


def xcov(x, y):
    """Pallas XCov forward. x: (B, Dx) or (B, A, C); y: (B, Dy). Returns f32 scalar."""
    b = x.shape[0]
    if x.ndim == 3:
        x = x.reshape(b, -1)  # same as torch .view(batch, -1)
    assert x.ndim == 2 and y.ndim == 2 and y.shape[0] == b
    d_x, d_y = x.shape[1], y.shape[1]

    # Generation-aware tile caps: v7x has 64 MiB VMEM per TensorCore,
    # v5e/v6e have 128 MiB.
    cap = _vmem_capacity_bytes()
    if cap >= (96 << 20):
        tb_max, tdx_max, tdy_max = 1024, 1024, 2048   # v5e / v6e
    else:
        tb_max, tdx_max, tdy_max = 1024, 512, 2048    # v7x

    # Column sums precomputed once (fused XLA reduce) -> off the per-step path.
    sx = jnp.sum(x.astype(jnp.float32), axis=0, keepdims=True)   # (1, d_x)
    sy = jnp.sum(y.astype(jnp.float32), axis=0, keepdims=True)   # (1, d_y)

    # Batch: pad only to the dtype sublane multiple (8/16/32), not 128.
    sub = max(_sublane_multiple(x.dtype), _sublane_multiple(y.dtype))
    if b <= tb_max:
        tb = _round_up(b, sub)
        bp = tb
    else:
        tb = tb_max
        bp = _round_up(b, tb)

    dx128 = _round_up(d_x, 128)
    dy128 = _round_up(d_y, 128)
    tdx, dxp = _pick_feature_tile(dx128, tdx_max)
    tdy, dyp = _pick_feature_tile(dy128, tdy_max)

    # Zero padding is exact: padded rows/cols contribute 0 to X^T Y, to the
    # column sums and to the squared-sum; true B is used for all scaling.
    if (bp, dxp) != x.shape:
        x = jnp.pad(x, ((0, bp - b), (0, dxp - d_x)))
    if (bp, dyp) != y.shape:
        y = jnp.pad(y, ((0, bp - b), (0, dyp - d_y)))
    if dxp != sx.shape[1]:
        sx = jnp.pad(sx, ((0, 0), (0, dxp - d_x)))
    if dyp != sy.shape[1]:
        sy = jnp.pad(sy, ((0, 0), (0, dyp - d_y)))

    n_dx, n_dy, n_b = dxp // tdx, dyp // tdy, bp // tb

    # Explicit VMEM budget: double-buffered inputs + f32 accumulator tile.
    needed = (2 * tb * tdx * x.dtype.itemsize
              + 2 * tb * tdy * y.dtype.itemsize
              + 2 * (tdx + tdy) * 4 + 2 * 128 * 4
              + tdx * tdy * 4)
    vmem_limit = max(32 << 20, int(needed * 1.25) + (2 << 20))
    vmem_limit = min(vmem_limit, max(cap - (8 << 20), 32 << 20))

    kernel = functools.partial(_xcov_kernel, inv_b=1.0 / float(b))

    partials = pl.pallas_call(
        kernel,
        out_shape=jax.ShapeDtypeStruct((1, 128 * n_dx * n_dy), jnp.float32),
        grid_spec=pltpu.PrefetchScalarGridSpec(
            num_scalar_prefetch=0,
            grid=(n_dx, n_dy, n_b),
            in_specs=[
                pl.BlockSpec((tb, tdx), lambda i, j, k: (k, i)),
                pl.BlockSpec((tb, tdy), lambda i, j, k: (k, j)),
                pl.BlockSpec((1, tdx), lambda i, j, k: (0, i)),
                pl.BlockSpec((1, tdy), lambda i, j, k: (0, j)),
            ],
            # Lane-dense, per-(i, j) partials: one 128-lane block per output
            # tile, written exactly once (at the last k step).
            out_specs=pl.BlockSpec((1, 128), lambda i, j, k: (0, i * n_dy + j)),
            scratch_shapes=[
                pltpu.VMEM((tdx, tdy), jnp.float32),   # X^T Y accumulator tile
            ],
        ),
        compiler_params=pltpu.CompilerParams(
            dimension_semantics=("parallel", "parallel", "arbitrary"),
            vmem_limit_bytes=vmem_limit,
        ),
    )(x, y, sx, sy)

    # Each 128-lane block holds one per-(i, j) tile partial (replicated).
    per_tile = partials.reshape(n_dx * n_dy, 128)[:, 0]
    return jnp.sum(per_tile) / (2.0 * float(b) * float(b))


def _xcov_ref(x, y):
    """Pure-JAX reference (two-pass centered form) for correctness checking."""
    batch = x.shape[0]
    if x.ndim == 3:
        x = x.reshape(batch, -1)
    dx = x - jnp.mean(x, axis=0, keepdims=True)
    dy = y - jnp.mean(y, axis=0, keepdims=True)
    c = dx.T.astype(jnp.float32) @ dy.astype(jnp.float32)
    return jnp.sum(c * c) / (2.0 * batch * batch)


if __name__ == "__main__":
    key = jax.random.PRNGKey(0)
    kx, ky = jax.random.split(key)

    # Small deterministic inputs: x is 3-D (exercises the view/flatten path),
    # y is 2-D, as the module implies.
    B, A, C, Dy = 8, 4, 8, 16           # x flattens to (8, 32)
    x = jax.random.normal(kx, (B, A, C), dtype=jnp.float32)
    y = jax.random.normal(ky, (B, Dy), dtype=jnp.float32)

    out = xcov(x, y)
    jax.block_until_ready(out)

    ref = _xcov_ref(x, y)
    assert jnp.allclose(out, ref, rtol=1e-4, atol=1e-5), (out, ref)

    print("KERNEL_OK")
</pallas_src>

<mosaic_0001>
module attributes {stable_mosaic.version = 11 : i64} {
  func.func @_xcov_kernel(%arg0: i32, %arg1: i32, %arg2: i32, %arg3: memref<8x128xf32, #tpu.memory_space<vmem>>, %arg4: memref<8x128xf32, #tpu.memory_space<vmem>>, %arg5: memref<1x128xf32, #tpu.memory_space<vmem>>, %arg6: memref<1x128xf32, #tpu.memory_space<vmem>>, %arg7: memref<1x128xf32, #tpu.memory_space<vmem>>, %arg8: memref<128x128xf32, #tpu.memory_space<vmem>>) attributes {dimension_semantics = [#tpu.dimension_semantics<parallel>, #tpu.dimension_semantics<parallel>, #tpu.dimension_semantics<arbitrary>], iteration_bounds = array<i64: 1, 1, 1>, scalar_prefetch = 0 : i64, scratch_operands = 1 : i64, tpu.core_type = #tpu.core_type<tc>, window_params = [{transform_indices = @transform_0, window_bounds = array<i64: 8, 128>}, {transform_indices = @transform_1, window_bounds = array<i64: 8, 128>}, {transform_indices = @transform_2, window_bounds = array<i64: 1, 128>}, {transform_indices = @transform_3, window_bounds = array<i64: 1, 128>}, {transform_indices = @transform_4, window_bounds = array<i64: 1, 128>}]} {
    %c0_i32 = arith.constant 0 : i32
    %0 = arith.cmpi eq, %arg2, %c0_i32 : i32
    %1 = arith.extui %0 : i1 to i32
    %c0_i32_0 = arith.constant 0 : i32
    %2 = arith.cmpi ne, %1, %c0_i32_0 : i32
    scf.if %2 {
      %cst_10 = arith.constant 0.000000e+00 : f32
      %12 = vector.broadcast %cst_10 : f32 to vector<128x128xf32>
      %c0_11 = arith.constant 0 : index
      %c0_12 = arith.constant 0 : index
      %13 = vector.load %arg8[%c0_11, %c0_12] : memref<128x128xf32, #tpu.memory_space<vmem>>, vector<128x128xf32>
      tpu.vector_store %arg8[%c0_11, %c0_12], %12 {strides = array<i32>} : memref<128x128xf32, #tpu.memory_space<vmem>>, vector<128x128xf32>,
    } else {
    }
    %c0 = arith.constant 0 : index
    %c0_1 = arith.constant 0 : index
    %3 = vector.load %arg8[%c0, %c0_1] : memref<128x128xf32, #tpu.memory_space<vmem>>, vector<128x128xf32>
    %c0_2 = arith.constant 0 : index
    %c0_3 = arith.constant 0 : index
    %4 = vector.load %arg3[%c0_2, %c0_3] : memref<8x128xf32, #tpu.memory_space<vmem>>, vector<8x128xf32>
    %c0_4 = arith.constant 0 : index
    %c0_5 = arith.constant 0 : index
    %5 = vector.load %arg4[%c0_4, %c0_5] : memref<8x128xf32, #tpu.memory_space<vmem>>, vector<8x128xf32>
    %cst = arith.constant dense<0.000000e+00> : vector<128x128xf32>
    %6 = tpu.matmul %4, %5, %cst {dimension_numbers = #tpu.dot_dimension_numbers<[0], [0], [1], [1], [0, 1, 1, 1], [], []>} : vector<8x128xf32>, vector<8x128xf32>, vector<128x128xf32> -> vector<128x128xf32>
    %7 = arith.addf %3, %6 : vector<128x128xf32>
    %c0_6 = arith.constant 0 : index
    %c0_7 = arith.constant 0 : index
    %8 = vector.load %arg8[%c0_6, %c0_7] : memref<128x128xf32, #tpu.memory_space<vmem>>, vector<128x128xf32>
    tpu.vector_store %arg8[%c0_6, %c0_7], %7 {strides = array<i32>} : memref<128x128xf32, #tpu.memory_space<vmem>>, vector<128x128xf32>,
    %c0_i32_8 = arith.constant 0 : i32
    %9 = arith.cmpi eq, %arg2, %c0_i32_8 : i32
    %10 = arith.extui %9 : i1 to i32
    %c0_i32_9 = arith.constant 0 : i32
    %11 = arith.cmpi ne, %10, %c0_i32_9 : i32
    scf.if %11 {
      %c0_10 = arith.constant 0 : index
      %c0_11 = arith.constant 0 : index
      %12 = vector.load %arg8[%c0_10, %c0_11] : memref<128x128xf32, #tpu.memory_space<vmem>>, vector<128x128xf32>
      %c0_12 = arith.constant 0 : index
      %c0_13 = arith.constant 0 : index
      %13 = vector.load %arg5[%c0_12, %c0_13] : memref<1x128xf32, #tpu.memory_space<vmem>>, vector<1x128xf32>
      %c0_14 = arith.constant 0 : index
      %c0_15 = arith.constant 0 : index
      %14 = vector.load %arg6[%c0_14, %c0_15] : memref<1x128xf32, #tpu.memory_space<vmem>>, vector<1x128xf32>
      %15 = arith.mulf %12, %12 : vector<128x128xf32>
      %16 = vector.shape_cast %15 : vector<128x128xf32> to vector<1x128x128xf32>
      %cst_16 = arith.constant dense<0.000000e+00> : vector<1xf32>
      %17 = vector.multi_reduction <add>, %16, %cst_16 [1, 2] : vector<1x128x128xf32> to vector<1xf32>
      %18 = vector.shape_cast %17 : vector<1xf32> to vector<1x1x1xf32>
      %19 = vector.extract %18[0, 0, 0] : f32 from vector<1x1x1xf32>
      %20 = vector.broadcast %19 : f32 to vector<1x1xf32>
      %cst_17 = arith.constant dense<0.000000e+00> : vector<1x128xf32>
      %21 = tpu.matmul %13, %12, %cst_17 {dimension_numbers = #tpu.dot_dimension_numbers<[1], [0], [0], [1], [0, 0, 1, 1], [], []>} : vector<1x128xf32>, vector<128x128xf32>, vector<1x128xf32> -> vector<1x128xf32>
      %22 = arith.mulf %21, %14 : vector<1x128xf32>
      %23 = vector.shape_cast %22 : vector<1x128xf32> to vector<1x1x128xf32>
      %cst_18 = arith.constant dense<0.000000e+00> : vector<1xf32>
      %24 = vector.multi_reduction <add>, %23, %cst_18 [1, 2] : vector<1x1x128xf32> to vector<1xf32>
      %25 = vector.shape_cast %24 : vector<1xf32> to vector<1x1x1xf32>
      %26 = vector.extract %25[0, 0, 0] : f32 from vector<1x1x1xf32>
      %27 = vector.broadcast %26 : f32 to vector<1x1xf32>
      %28 = arith.mulf %13, %13 : vector<1x128xf32>
      %29 = vector.shape_cast %28 : vector<1x128xf32> to vector<1x1x128xf32>
      %cst_19 = arith.constant dense<0.000000e+00> : vector<1xf32>
      %30 = vector.multi_reduction <add>, %29, %cst_19 [1, 2] : vector<1x1x128xf32> to vector<1xf32>
      %31 = vector.shape_cast %30 : vector<1xf32> to vector<1x1x1xf32>
      %32 = vector.extract %31[0, 0, 0] : f32 from vector<1x1x1xf32>
      %33 = vector.broadcast %32 : f32 to vector<1x1xf32>
      %34 = arith.mulf %14, %14 : vector<1x128xf32>
      %35 = vector.shape_cast %34 : vector<1x128xf32> to vector<1x1x128xf32>
      %cst_20 = arith.constant dense<0.000000e+00> : vector<1xf32>
      %36 = vector.multi_reduction <add>, %35, %cst_20 [1, 2] : vector<1x1x128xf32> to vector<1xf32>
      %37 = vector.shape_cast %36 : vector<1xf32> to vector<1x1x1xf32>
      %38 = vector.extract %37[0, 0, 0] : f32 from vector<1x1x1xf32>
      %39 = vector.broadcast %38 : f32 to vector<1x1xf32>
      %cst_21 = arith.constant 2.500000e-01 : f32
      %40 = vector.broadcast %cst_21 : f32 to vector<1x1xf32>
      %41 = arith.mulf %40, %27 : vector<1x1xf32>
      %42 = arith.subf %20, %41 : vector<1x1xf32>
      %43 = arith.mulf %33, %39 : vector<1x1xf32>
      %cst_22 = arith.constant 1.562500e-02 : f32
      %44 = vector.broadcast %cst_22 : f32 to vector<1x1xf32>
      %45 = arith.mulf %44, %43 : vector<1x1xf32>
      %46 = arith.addf %42, %45 : vector<1x1xf32>
      %47 = vector.shape_cast %46 : vector<1x1xf32> to vector<1x1xf32>
      %48 = vector.broadcast %47 : vector<1x1xf32> to vector<1x128xf32>
      %c0_23 = arith.constant 0 : index
      %c0_24 = arith.constant 0 : index
      %49 = vector.load %arg7[%c0_23, %c0_24] : memref<1x128xf32, #tpu.memory_space<vmem>>, vector<1x128xf32>
      tpu.vector_store %arg7[%c0_23, %c0_24], %48 {strides = array<i32>} : memref<1x128xf32, #tpu.memory_space<vmem>>, vector<1x128xf32>,
    } else {
    }
    return
  }
  func.func @transform_0(%arg0: i32, %arg1: i32, %arg2: i32) -> (i32, i32) {
    %c0_i32 = arith.constant 0 : i32
    return %arg2, %arg0 : i32, i32
  }
  func.func @transform_1(%arg0: i32, %arg1: i32, %arg2: i32) -> (i32, i32) {
    %c0_i32 = arith.constant 0 : i32
    return %arg2, %arg1 : i32, i32
  }
  func.func @transform_2(%arg0: i32, %arg1: i32, %arg2: i32) -> (i32, i32) {
    %c0_i32 = arith.constant 0 : i32
    %c0_i32_0 = arith.constant 0 : i32
    return %c0_i32, %arg0 : i32, i32
  }
  func.func @transform_3(%arg0: i32, %arg1: i32, %arg2: i32) -> (i32, i32) {
    %c0_i32 = arith.constant 0 : i32
    %c0_i32_0 = arith.constant 0 : i32
    return %c0_i32, %arg1 : i32, i32
  }
  func.func @transform_4(%arg0: i32, %arg1: i32, %arg2: i32) -> (i32, i32) {
    %c1_i32 = arith.constant 1 : i32
    %0 = arith.muli %arg0, %c1_i32 : i32
    %1 = arith.addi %0, %arg1 : i32
    %c0_i32 = arith.constant 0 : i32
    %c0_i32_0 = arith.constant 0 : i32
    return %c0_i32, %1 : i32, i32
  }
}

</mosaic_0001>

<llo_original>
// kernel: tpu_custom_call.1
$region0: #{tpu_custom_call.1}
  #allocation0 [shape = 'u32[]', space=smem, size = 0x4, offset = 0x4, fixed_abs, tag = 'smem constant byte address 0x4 - core index']
  #allocation1 [shape = 'u32[144,128]{1,0:T(1,128)}', space=vmem, size = 0x12000, scoped, tag = 'internal scratch']
  #allocation2 [shape = 'f32[128,128]{1,0:T(8,128)}', space=vmem, size = 0x10000, scoped, tag = 'scratch operand']
  %s0 = inlined_call_operand.hbm [shape: f32[8,128], index: 0, kind: input, shape index: {}]
  %s1 = inlined_call_operand.hbm [shape: f32[8,128], index: 1, kind: input, shape index: {}]
  %s2 = inlined_call_operand.vmem [shape: f32[1,128], index: 2, kind: input, shape index: {}]
  %s3 = inlined_call_operand.vmem [shape: f32[1,128], index: 3, kind: input, shape index: {}]
  %s4 = inlined_call_operand.hbm [shape: f32[1,128], index: 4, kind: output, shape index: {}]
  %s5 = sld [smem:[#allocation0]]
  $region42: #{tpu_custom_call.1} parent=0
    _
  %s7 = ssub.s32 1, %s5
  %s8 = scalar_select 0, %s7, %s5
  $region1: #{tpu_custom_call.1} parent=0
    #allocation3 [shape = 'u8[4096]{0}', space=vmem, size = 0x1000, scoped, tag = 'input window, operand 0, single buffered']
    #allocation4 [shape = 's32[1]{0}', space=sflag, size = 0x4, scoped, tag = 'scoped memory for tpu_custom_call.1']
    #allocation5 [shape = 's32[1]{0}', space=sflag, size = 0x4, scoped, tag = 'scoped memory for tpu_custom_call.1']
    #allocation6 [shape = 'u8[4096]{0}', space=vmem, size = 0x1000, scoped, tag = 'input window, operand 1, single buffered']
    #allocation7 [shape = 's32[1]{0}', space=sflag, size = 0x4, scoped, tag = 'scoped memory for tpu_custom_call.1']
    #allocation8 [shape = 'u8[512]{0}', space=vmem, size = 0x400, scoped, tag = 'output window, operand 0, single buffered']
    %9 = vsyncpa [#allocation4], 0
    %10 = vsyncpa [#allocation7], 0
    %11 = vsyncpa [#allocation5], 0
    // Predicated region
    $region2: #{tpu_custom_call.1} parent=1 // pred_check
      _
    $region3: #{tpu_custom_call.1} parent=1 // pred_check_branch
      %13 = sbr.rel (0) target = $region5
    $region4: #{tpu_custom_call.1} parent=1 // pred_region
      %s15 = ssub.s32 128, 128
      %16 = vsyncadd [#allocation4], %s15
      %s18 = sshll.u32 [#allocation3], 4
      %s19 = int_to_ptr.vmem [resolvable:$true] %s18
      %21 = dma.hbm_to_vmem [thread:$0]  %s0, 128, %s19, [#allocation4]
    $region5: #{tpu_custom_call.1} parent=1 // pred_fallthru
      _
    // Predicated region
    $region6: #{tpu_custom_call.1} parent=1 // pred_check
      _
    $region7: #{tpu_custom_call.1} parent=1 // pred_check_branch
      %23 = sbr.rel (0) target = $region9
    $region8: #{tpu_custom_call.1} parent=1 // pred_region
      %s25 = ssub.s32 128, 128
      %26 = vsyncadd [#allocation7], %s25
      %s28 = sshll.u32 [#allocation6], 4
      %s29 = int_to_ptr.vmem [resolvable:$true] %s28
      %31 = dma.hbm_to_vmem [thread:$0]  %s1, 128, %s29, [#allocation7]
    $region9: #{tpu_custom_call.1} parent=1 // pred_fallthru
      _
    // Predicated region
    $region10: #{tpu_custom_call.1} parent=1 // pred_check
      _
    $region11: #{tpu_custom_call.1} parent=1 // pred_check_branch
      %33 = sbr.rel (0) target = $region13
    $region12: #{tpu_custom_call.1} parent=1 // pred_region
      _
    $region13: #{tpu_custom_call.1} parent=1 // pred_fallthru
      _
    // Predicated region
    $region14: #{tpu_custom_call.1} parent=1 // pred_check
      _
    $region15: #{tpu_custom_call.1} parent=1 // pred_check_branch
      %35 = sbr.rel (0) target = $region17
    $region16: #{tpu_custom_call.1} parent=1 // pred_region
      _
    $region17: #{tpu_custom_call.1} parent=1 // pred_fallthru
      _
    // Predicated region
    $region18: #{tpu_custom_call.1} parent=1 // pred_check
      _
    $region19: #{tpu_custom_call.1} parent=1 // pred_check_branch
      %37 = sbr.rel (0) target = $region21
    $region20: #{tpu_custom_call.1} parent=1 // pred_region
      %38 = dma.done [#allocation4], 128
    $region21: #{tpu_custom_call.1} parent=1 // pred_fallthru
      _
    // Predicated region
    $region22: #{tpu_custom_call.1} parent=1 // pred_check
      _
    $region23: #{tpu_custom_call.1} parent=1 // pred_check_branch
      %40 = sbr.rel (0) target = $region25
    $region24: #{tpu_custom_call.1} parent=1 // pred_region
      %41 = dma.done [#allocation7], 128
    $region25: #{tpu_custom_call.1} parent=1 // pred_fallthru
      _
    %s42 = sadd.s32 0, 0
    %p43 = scmp.eq.s32.totalorder 0, 0
    // Predicated region
    $region26: #{tpu_custom_call.1} parent=1 // pred_check
      %p44 = pneg %p43
    $region27: #{tpu_custom_call.1} parent=1 // pred_check_branch
      %46 = sbr.rel (%p44) target = $region29
    $region28: #{tpu_custom_call.1} parent=1 // pred_region
      %47 = vst [vmem:[#allocation2] sm:$0xff] 0.0
      %48 = vst [vmem:[#allocation2 + $0x8] sm:$0xff] 0.0
      %49 = vst [vmem:[#allocation2 + $0x10] sm:$0xff] 0.0
      %50 = vst [vmem:[#allocation2 + $0x18] sm:$0xff] 0.0
      %51 = vst [vmem:[#allocation2 + $0x20] sm:$0xff] 0.0
      %52 = vst [vmem:[#allocation2 + $0x28] sm:$0xff] 0.0
      %53 = vst [vmem:[#allocation2 + $0x30] sm:$0xff] 0.0
      %54 = vst [vmem:[#allocation2 + $0x38] sm:$0xff] 0.0
      %55 = vst [vmem:[#allocation2 + $0x40] sm:$0xff] 0.0
      %56 = vst [vmem:[#allocation2 + $0x48] sm:$0xff] 0.0
      %57 = vst [vmem:[#allocation2 + $0x50] sm:$0xff] 0.0
      %58 = vst [vmem:[#allocation2 + $0x58] sm:$0xff] 0.0
      %59 = vst [vmem:[#allocation2 + $0x60] sm:$0xff] 0.0
      %60 = vst [vmem:[#allocation2 + $0x68] sm:$0xff] 0.0
      %61 = vst [vmem:[#allocation2 + $0x70] sm:$0xff] 0.0
      %62 = vst [vmem:[#allocation2 + $0x78] sm:$0xff] 0.0
    $region29: #{tpu_custom_call.1} parent=1 // pred_fallthru
      _
    %v63 = vld [vmem:[#allocation2] sm:$0xff]
    %v64 = vld [vmem:[#allocation2 + $0x8] sm:$0xff]
    %v65 = vld [vmem:[#allocation2 + $0x10] sm:$0xff]
    %v66 = vld [vmem:[#allocation2 + $0x18] sm:$0xff]
    %v67 = vld [vmem:[#allocation2 + $0x20] sm:$0xff]
    %v68 = vld [vmem:[#allocation2 + $0x28] sm:$0xff]
    %v69 = vld [vmem:[#allocation2 + $0x30] sm:$0xff]
    %v70 = vld [vmem:[#allocation2 + $0x38] sm:$0xff]
    %v71 = vld [vmem:[#allocation2 + $0x40] sm:$0xff]
    %v72 = vld [vmem:[#allocation2 + $0x48] sm:$0xff]
    %v73 = vld [vmem:[#allocation2 + $0x50] sm:$0xff]
    %v74 = vld [vmem:[#allocation2 + $0x58] sm:$0xff]
    %v75 = vld [vmem:[#allocation2 + $0x60] sm:$0xff]
    %v76 = vld [vmem:[#allocation2 + $0x68] sm:$0xff]
    %v77 = vld [vmem:[#allocation2 + $0x70] sm:$0xff]
    %v78 = vld [vmem:[#allocation2 + $0x78] sm:$0xff]
    %v79 = vld [vmem:[#allocation3] sm:$0xff]
    %v80 = vld [vmem:[#allocation6] sm:$0xff]
    %81 = vxpose.xlu0.b32.start [1/16] %v79, 128
    %82 = vxpose.xlu0.b32.cont [2/16] 0.0, 128
    %83 = vxpose.xlu0.b32.cont [3/16] 0.0, 128
    %84 = vxpose.xlu0.b32.cont [4/16] 0.0, 128
    %85 = vxpose.xlu0.b32.cont [5/16] 0.0, 128
    %86 = vxpose.xlu0.b32.cont [6/16] 0.0, 128
    %87 = vxpose.xlu0.b32.cont [7/16] 0.0, 128
    %88 = vxpose.xlu0.b32.cont [8/16] 0.0, 128
    %89 = vxpose.xlu0.b32.cont [9/16] 0.0, 128
    %90 = vxpose.xlu0.b32.cont [10/16] 0.0, 128
    %91 = vxpose.xlu0.b32.cont [11/16] 0.0, 128
    %92 = vxpose.xlu0.b32.cont [12/16] 0.0, 128
    %93 = vxpose.xlu0.b32.cont [13/16] 0.0, 128
    %94 = vxpose.xlu0.b32.cont [14/16] 0.0, 128
    %95 = vxpose.xlu0.b32.cont [15/16] 0.0, 128
    %96 = vxpose.xlu0.b32.end [16/16] 0.0, 128
    %v97 = vpop.trf.xlu0
    %v98 = vpop.trf.xlu0
    %v99 = vpop.trf.xlu0
    %v100 = vpop.trf.xlu0
    %v101 = vpop.trf.xlu0
    %v102 = vpop.trf.xlu0
    %v103 = vpop.trf.xlu0
    %v104 = vpop.trf.xlu0
    %v105 = vpop.trf.xlu0
    %v106 = vpop.trf.xlu0
    %v107 = vpop.trf.xlu0
    %v108 = vpop.trf.xlu0
    %v109 = vpop.trf.xlu0
    %v110 = vpop.trf.xlu0
    %v111 = vpop.trf.xlu0
    %v112 = vpop.trf.xlu0
    %vm113 = vcmask 64512
    %v115 = vsel %vm113, %v97, 0
    %v118 = vsel %vm113, %v98, 0
    %v121 = vsel %vm113, %v99, 0
    %v124 = vsel %vm113, %v100, 0
    %v127 = vsel %vm113, %v101, 0
    %v130 = vsel %vm113, %v102, 0
    %v133 = vsel %vm113, %v103, 0
    %v136 = vsel %vm113, %v104, 0
    %v139 = vsel %vm113, %v105, 0
    %v142 = vsel %vm113, %v106, 0
    %v145 = vsel %vm113, %v107, 0
    %v148 = vsel %vm113, %v108, 0
    %v151 = vsel %vm113, %v109, 0
    %v154 = vsel %vm113, %v110, 0
    %v157 = vsel %vm113, %v111, 0
    %v160 = vsel %vm113, %v112, 0
    %162 = vmatprep.subr.mxu0 0.0
    %163 = vmatpush1.msra.mxu0 %v80
    %164 = vmatprep.subr.mxu0 0.0
    %165 = vmatpush1.msra.mxu0 0.0
    %166 = vmatprep.subr.mxu0 0.0
    %167 = vmatpush1.msra.mxu0 0.0
    %168 = vmatprep.subr.mxu0 0.0
    %169 = vmatpush1.msra.mxu0 0.0
    %170 = vmatprep.subr.mxu0 0.0
    %171 = vmatpush1.msra.mxu0 0.0
    %172 = vmatprep.subr.mxu0 0.0
    %173 = vmatpush1.msra.mxu0 0.0
    %174 = vmatprep.subr.mxu0 0.0
    %175 = vmatpush1.msra.mxu0 0.0
    %176 = vmatprep.subr.mxu0 0.0
    %177 = vmatpush1.msra.mxu0 0.0
    %178 = vmatprep.subr.mxu0 0.0
    %179 = vmatpush1.msra.mxu0 0.0
    %180 = vmatprep.subr.mxu0 0.0
    %181 = vmatpush1.msra.mxu0 0.0
    %182 = vmatprep.subr.mxu0 0.0
    %183 = vmatpush1.msra.mxu0 0.0
    %184 = vmatprep.subr.mxu0 0.0
    %185 = vmatpush1.msra.mxu0 0.0
    %186 = vmatprep.subr.mxu0 0.0
    %187 = vmatpush1.msra.mxu0 0.0
    %188 = vmatprep.subr.mxu0 0.0
    %189 = vmatpush1.msra.mxu0 0.0
    %190 = vmatprep.subr.mxu0 0.0
    %191 = vmatpush1.msra.mxu0 0.0
    %192 = vmatprep.subr.mxu0 0.0
    %193 = vmatpush1.msra.mxu0 0.0
    %194 = vmatprep.subr.mxu0 0.0
    %195 = vmatpush1.msra.mxu0 0.0
    %196 = vmatprep.subr.mxu0 0.0
    %197 = vmatpush1.msra.mxu0 0.0
    %198 = vmatprep.subr.mxu0 0.0
    %199 = vmatpush1.msra.mxu0 0.0
    %200 = vmatprep.subr.mxu0 0.0
    %201 = vmatpush1.msra.mxu0 0.0
    %202 = vmatprep.subr.mxu0 0.0
    %203 = vmatpush1.msra.mxu0 0.0
    %204 = vmatprep.subr.mxu0 0.0
    %205 = vmatpush1.msra.mxu0 0.0
    %206 = vmatprep.subr.mxu0 0.0
    %207 = vmatpush1.msra.mxu0 0.0
    %208 = vmatprep.subr.mxu0 0.0
    %209 = vmatpush1.msra.mxu0 0.0
    %210 = vmatprep.subr.mxu0 0.0
    %211 = vmatpush1.msra.mxu0 0.0
    %212 = vmatprep.subr.mxu0 0.0
    %213 = vmatpush1.msra.mxu0 0.0
    %214 = vmatprep.subr.mxu0 0.0
    %215 = vmatpush1.msra.mxu0 0.0
    %216 = vmatprep.subr.mxu0 0.0
    %217 = vmatpush1.msra.mxu0 0.0
    %218 = vmatprep.subr.mxu0 0.0
    %219 = vmatpush1.msra.mxu0 0.0
    %220 = vmatprep.subr.mxu0 0.0
    %221 = vmatpush1.msra.mxu0 0.0
    %222 = vmatprep.subr.mxu0 0.0
    %223 = vmatpush1.msra.mxu0 0.0
    %224 = vmatprep.subr.mxu0 0.0
    %225 = vmatpush1.msra.mxu0 0.0
    %226 = vmatprep.mubr.f32.mxu0 0.0
    %227 = vmatmul.mubr.f32.gmra.mrb[0].mxu0 %v115
    %v228 = vpop.f32.mrb[0].mxu0
    %v229 = vadd.f32 0.0, %v228
    %v230 = vpop.f32.mrb[0].mxu0
    %231 = vmatprep.mubr.f32.mxu0 0.0
    %232 = vmatmul.mubr.f32.gmra.mrb[0].mxu0 %v118
    %v233 = vpop.f32.mrb[0].mxu0
    %v234 = vadd.f32 0.0, %v233
    %v235 = vpop.f32.mrb[0].mxu0
    %236 = vmatprep.mubr.f32.mxu0 0.0
    %237 = vmatmul.mubr.f32.gmra.mrb[0].mxu0 %v121
    %v238 = vpop.f32.mrb[0].mxu0
    %v239 = vadd.f32 0.0, %v238
    %v240 = vpop.f32.mrb[0].mxu0
    %241 = vmatprep.mubr.f32.mxu0 0.0
    %242 = vmatmul.mubr.f32.gmra.mrb[0].mxu0 %v124
    %v243 = vpop.f32.mrb[0].mxu0
    %v244 = vadd.f32 0.0, %v243
    %v245 = vpop.f32.mrb[0].mxu0
    %246 = vmatprep.mubr.f32.mxu0 0.0
    %247 = vmatmul.mubr.f32.gmra.mrb[0].mxu0 %v127
    %v248 = vpop.f32.mrb[0].mxu0
    %v249 = vadd.f32 0.0, %v248
    %v250 = vpop.f32.mrb[0].mxu0
    %251 = vmatprep.mubr.f32.mxu0 0.0
    %252 = vmatmul.mubr.f32.gmra.mrb[0].mxu0 %v130
    %v253 = vpop.f32.mrb[0].mxu0
    %v254 = vadd.f32 0.0, %v253
    %v255 = vpop.f32.mrb[0].mxu0
    %256 = vmatprep.mubr.f32.mxu0 0.0
    %257 = vmatmul.mubr.f32.gmra.mrb[0].mxu0 %v133
    %v258 = vpop.f32.mrb[0].mxu0
    %v259 = vadd.f32 0.0, %v258
    %v260 = vpop.f32.mrb[0].mxu0
    %261 = vmatprep.mubr.f32.mxu0 0.0
    %262 = vmatmul.mubr.f32.gmra.mrb[0].mxu0 %v136
    %v263 = vpop.f32.mrb[0].mxu0
    %v264 = vadd.f32 0.0, %v263
    %v265 = vpop.f32.mrb[0].mxu0
    %266 = vmatprep.mubr.f32.mxu0 0.0
    %267 = vmatmul.mubr.f32.gmra.mrb[0].mxu0 %v139
    %v268 = vpop.f32.mrb[0].mxu0
    %v269 = vadd.f32 0.0, %v268
    %v270 = vpop.f32.mrb[0].mxu0
    %271 = vmatprep.mubr.f32.mxu0 0.0
    %272 = vmatmul.mubr.f32.gmra.mrb[0].mxu0 %v142
    %v273 = vpop.f32.mrb[0].mxu0
    %v274 = vadd.f32 0.0, %v273
    %v275 = vpop.f32.mrb[0].mxu0
    %276 = vmatprep.mubr.f32.mxu0 0.0
    %277 = vmatmul.mubr.f32.gmra.mrb[0].mxu0 %v145
    %v278 = vpop.f32.mrb[0].mxu0
    %v279 = vadd.f32 0.0, %v278
    %v280 = vpop.f32.mrb[0].mxu0
    %281 = vmatprep.mubr.f32.mxu0 0.0
    %282 = vmatmul.mubr.f32.gmra.mrb[0].mxu0 %v148
    %v283 = vpop.f32.mrb[0].mxu0
    %v284 = vadd.f32 0.0, %v283
    %v285 = vpop.f32.mrb[0].mxu0
    %286 = vmatprep.mubr.f32.mxu0 0.0
    %287 = vmatmul.mubr.f32.gmra.mrb[0].mxu0 %v151
    %v288 = vpop.f32.mrb[0].mxu0
    %v289 = vadd.f32 0.0, %v288
    %v290 = vpop.f32.mrb[0].mxu0
    %291 = vmatprep.mubr.f32.mxu0 0.0
    %292 = vmatmul.mubr.f32.gmra.mrb[0].mxu0 %v154
    %v293 = vpop.f32.mrb[0].mxu0
    %v294 = vadd.f32 0.0, %v293
    %v295 = vpop.f32.mrb[0].mxu0
    %296 = vmatprep.mubr.f32.mxu0 0.0
    %297 = vmatmul.mubr.f32.gmra.mrb[0].mxu0 %v157
    %v298 = vpop.f32.mrb[0].mxu0
    %v299 = vadd.f32 0.0, %v298
    %v300 = vpop.f32.mrb[0].mxu0
    %301 = vmatprep.mubr.f32.mxu0 0.0
    %302 = vmatmul.mubr.f32.gmra.mrb[0].mxu0 %v160
    %v303 = vpop.f32.mrb[0].mxu0
    %v304 = vadd.f32 0.0, %v303
    %v305 = vpop.f32.mrb[0].mxu0
    %306 = vdwg.mxu0
    %v307 = vadd.f32 %v63, %v229
    %v308 = vadd.f32 %v64, %v234
    %v309 = vadd.f32 %v65, %v239
    %v310 = vadd.f32 %v66, %v244
    %v311 = vadd.f32 %v67, %v249
    %v312 = vadd.f32 %v68, %v254
    %v313 = vadd.f32 %v69, %v259
    %v314 = vadd.f32 %v70, %v264
    %v315 = vadd.f32 %v71, %v269
    %v316 = vadd.f32 %v72, %v274
    %v317 = vadd.f32 %v73, %v279
    %v318 = vadd.f32 %v74, %v284
    %v319 = vadd.f32 %v75, %v289
    %v320 = vadd.f32 %v76, %v294
    %v321 = vadd.f32 %v77, %v299
    %v322 = vadd.f32 %v78, %v304
    %323 = vst [vmem:[#allocation2] sm:$0xff] %v307
    %324 = vst [vmem:[#allocation2 + $0x8] sm:$0xff] %v308
    %325 = vst [vmem:[#allocation2 + $0x10] sm:$0xff] %v309
    %326 = vst [vmem:[#allocation2 + $0x18] sm:$0xff] %v310
    %327 = vst [vmem:[#allocation2 + $0x20] sm:$0xff] %v311
    %328 = vst [vmem:[#allocation2 + $0x28] sm:$0xff] %v312
    %329 = vst [vmem:[#allocation2 + $0x30] sm:$0xff] %v313
    %330 = vst [vmem:[#allocation2 + $0x38] sm:$0xff] %v314
    %331 = vst [vmem:[#allocation2 + $0x40] sm:$0xff] %v315
    %332 = vst [vmem:[#allocation2 + $0x48] sm:$0xff] %v316
    %333 = vst [vmem:[#allocation2 + $0x50] sm:$0xff] %v317
    %334 = vst [vmem:[#allocation2 + $0x58] sm:$0xff] %v318
    %335 = vst [vmem:[#allocation2 + $0x60] sm:$0xff] %v319
    %336 = vst [vmem:[#allocation2 + $0x68] sm:$0xff] %v320
    %337 = vst [vmem:[#allocation2 + $0x70] sm:$0xff] %v321
    %338 = vst [vmem:[#allocation2 + $0x78] sm:$0xff] %v322
    // Predicated region
    $region30: #{tpu_custom_call.1} parent=1 // pred_check
      %p339 = pneg %p43
    $region31: #{tpu_custom_call.1} parent=1 // pred_check_branch
      %341 = sbr.rel (%p339) target = $region33
    $region32: #{tpu_custom_call.1} parent=1 // pred_region
      %v342 = vld [vmem:[#allocation2] sm:$0xff]
      %v343 = vld [vmem:[#allocation2 + $0x8] sm:$0xff]
      %v344 = vld [vmem:[#allocation2 + $0x10] sm:$0xff]
      %v345 = vld [vmem:[#allocation2 + $0x18] sm:$0xff]
      %v346 = vld [vmem:[#allocation2 + $0x20] sm:$0xff]
      %v347 = vld [vmem:[#allocation2 + $0x28] sm:$0xff]
      %v348 = vld [vmem:[#allocation2 + $0x30] sm:$0xff]
      %v349 = vld [vmem:[#allocation2 + $0x38] sm:$0xff]
      %v350 = vld [vmem:[#allocation2 + $0x40] sm:$0xff]
      %v351 = vld [vmem:[#allocation2 + $0x48] sm:$0xff]
      %v352 = vld [vmem:[#allocation2 + $0x50] sm:$0xff]
      %v353 = vld [vmem:[#allocation2 + $0x58] sm:$0xff]
      %v354 = vld [vmem:[#allocation2 + $0x60] sm:$0xff]
      %v355 = vld [vmem:[#allocation2 + $0x68] sm:$0xff]
      %v356 = vld [vmem:[#allocation2 + $0x70] sm:$0xff]
      %v357 = vld [vmem:[#allocation2 + $0x78] sm:$0xff]
      %v358 = vld [vmem:[%s2] sm:$0x1]
      %v359 = vld [vmem:[%s3] sm:$0x1]
      %v360 = vmul.f32 %v342, %v342
      %v361 = vmul.f32 %v343, %v343
      %v362 = vmul.f32 %v344, %v344
      %v363 = vmul.f32 %v345, %v345
      %v364 = vmul.f32 %v346, %v346
      %v365 = vmul.f32 %v347, %v347
      %v366 = vmul.f32 %v348, %v348
      %v367 = vmul.f32 %v349, %v349
      %v368 = vmul.f32 %v350, %v350
      %v369 = vmul.f32 %v351, %v351
      %v370 = vmul.f32 %v352, %v352
      %v371 = vmul.f32 %v353, %v353
      %v372 = vmul.f32 %v354, %v354
      %v373 = vmul.f32 %v355, %v355
      %v374 = vmul.f32 %v356, %v356
      %v375 = vmul.f32 %v357, %v357
      %v376 = vadd.f32 %v360, %v361
      %v377 = vadd.f32 %v376, %v362
      %v378 = vadd.f32 %v377, %v363
      %v379 = vadd.f32 %v378, %v364
      %v380 = vadd.f32 %v379, %v365
      %v381 = vadd.f32 %v380, %v366
      %v382 = vadd.f32 %v381, %v367
      %v383 = vadd.f32 %v382, %v368
      %v384 = vadd.f32 %v383, %v369
      %v385 = vadd.f32 %v384, %v370
      %v386 = vadd.f32 %v385, %v371
      %v387 = vadd.f32 %v386, %v372
      %v388 = vadd.f32 %v387, %v373
      %v389 = vadd.f32 %v388, %v374
      %v390 = vadd.f32 %v389, %v375
      %391 = vadd.xlane.f32.xlu0 %v390
      %v392 = vpop.xlane.xlu0 %391
      %v393 = vrot.slane %v392, 4
      %v394 = vadd.f32 %v392, %v393
      %v395 = vrot.slane %v394, 2
      %v396 = vadd.f32 %v394, %v395
      %v397 = vrot.slane %v396, 1
      %v398 = vadd.f32 %v396, %v397
      %s399 = vtos %v398
      %v400 = vstv %s399
      %401 = vmatprep.subr.mxu0 0.0
      %402 = vmatpush1.msra.mxu0 %v342
      %403 = vmatprep.subr.mxu0 0.0
      %404 = vmatpush1.msra.mxu0 %v343
      %405 = vmatprep.subr.mxu0 0.0
      %406 = vmatpush1.msra.mxu0 %v344
      %407 = vmatprep.subr.mxu0 0.0
      %408 = vmatpush1.msra.mxu0 %v345
      %409 = vmatprep.subr.mxu0 0.0
      %410 = vmatpush1.msra.mxu0 %v346
      %411 = vmatprep.subr.mxu0 0.0
      %412 = vmatpush1.msra.mxu0 %v347
      %413 = vmatprep.subr.mxu0 0.0
      %414 = vmatpush1.msra.mxu0 %v348
      %415 = vmatprep.subr.mxu0 0.0
      %416 = vmatpush1.msra.mxu0 %v349
      %417 = vmatprep.subr.mxu0 0.0
      %418 = vmatpush1.msra.mxu0 %v350
      %419 = vmatprep.subr.mxu0 0.0
      %420 = vmatpush1.msra.mxu0 %v351
      %421 = vmatprep.subr.mxu0 0.0
      %422 = vmatpush1.msra.mxu0 %v352
      %423 = vmatprep.subr.mxu0 0.0
      %424 = vmatpush1.msra.mxu0 %v353
      %425 = vmatprep.subr.mxu0 0.0
      %426 = vmatpush1.msra.mxu0 %v354
      %427 = vmatprep.subr.mxu0 0.0
      %428 = vmatpush1.msra.mxu0 %v355
      %429 = vmatprep.subr.mxu0 0.0
      %430 = vmatpush1.msra.mxu0 %v356
      %431 = vmatprep.subr.mxu0 0.0
      %432 = vmatpush1.msra.mxu0 %v357
      %433 = vmatprep.subr.mxu0 0.0
      %434 = vmatpush1.msra.mxu0 0.0
      %435 = vmatprep.subr.mxu0 0.0
      %436 = vmatpush1.msra.mxu0 0.0
      %437 = vmatprep.subr.mxu0 0.0
      %438 = vmatpush1.msra.mxu0 0.0
      %439 = vmatprep.subr.mxu0 0.0
      %440 = vmatpush1.msra.mxu0 0.0
      %441 = vmatprep.subr.mxu0 0.0
      %442 = vmatpush1.msra.mxu0 0.0
      %443 = vmatprep.subr.mxu0 0.0
      %444 = vmatpush1.msra.mxu0 0.0
      %445 = vmatprep.subr.mxu0 0.0
      %446 = vmatpush1.msra.mxu0 0.0
      %447 = vmatprep.subr.mxu0 0.0
      %448 = vmatpush1.msra.mxu0 0.0
      %449 = vmatprep.subr.mxu0 0.0
      %450 = vmatpush1.msra.mxu0 0.0
      %451 = vmatprep.subr.mxu0 0.0
      %452 = vmatpush1.msra.mxu0 0.0
      %453 = vmatprep.subr.mxu0 0.0
      %454 = vmatpush1.msra.mxu0 0.0
      %455 = vmatprep.subr.mxu0 0.0
      %456 = vmatpush1.msra.mxu0 0.0
      %457 = vmatprep.subr.mxu0 0.0
      %458 = vmatpush1.msra.mxu0 0.0
      %459 = vmatprep.subr.mxu0 0.0
      %460 = vmatpush1.msra.mxu0 0.0
      %461 = vmatprep.subr.mxu0 0.0
      %462 = vmatpush1.msra.mxu0 0.0
      %463 = vmatprep.subr.mxu0 0.0
      %464 = vmatpush1.msra.mxu0 0.0
      %465 = vmatprep.mubr.f32.mxu0 0.0
      %466 = vmatmul.mubr.f32.gmra.mrb[0].mxu0 %v358
      %v467 = vpop.f32.mrb[0].mxu0
      %v468 = vadd.f32 0.0, %v467
      %v469 = vpop.f32.mrb[0].mxu0
      %470 = vdwg.mxu0
      %v471 = vmul.f32 %v468, %v359
      %vm472 = vcmask 1040384
      %v473 = vsel %vm472, %v471, 0.0
      %474 = vadd.xlane.f32.xlu0 %v473
      %v475 = vpop.xlane.xlu0 %474
      %v476 = vrot.slane %v475, 4
      %v477 = vadd.f32 %v475, %v476
      %v478 = vrot.slane %v477, 2
      %v479 = vadd.f32 %v477, %v478
      %v480 = vrot.slane %v479, 1
      %v481 = vadd.f32 %v479, %v480
      %s482 = vtos %v481
      %v483 = vstv %s482
      %v484 = vmul.f32 %v358, %v358
      %v485 = vsel %vm472, %v484, 0.0
      %486 = vadd.xlane.f32.xlu0 %v485
      %v487 = vpop.xlane.xlu0 %486
      %v488 = vrot.slane %v487, 4
      %v489 = vadd.f32 %v487, %v488
      %v490 = vrot.slane %v489, 2
      %v491 = vadd.f32 %v489, %v490
      %v492 = vrot.slane %v491, 1
      %v493 = vadd.f32 %v491, %v492
      %s494 = vtos %v493
      %v495 = vstv %s494
      %v496 = vmul.f32 %v359, %v359
      %v497 = vsel %vm472, %v496, 0.0
      %498 = vadd.xlane.f32.xlu0 %v497
      %v499 = vpop.xlane.xlu0 %498
      %v500 = vrot.slane %v499, 4
      %v501 = vadd.f32 %v499, %v500
      %v502 = vrot.slane %v501, 2
      %v503 = vadd.f32 %v501, %v502
      %v504 = vrot.slane %v503, 1
      %v505 = vadd.f32 %v503, %v504
      %s506 = vtos %v505
      %v507 = vstv %s506
      %v508 = vmul.f32 %v483, 0.25
      %v509 = vsub.f32 %v400, %v508
      %v510 = vmul.f32 %v495, %v507
      %v511 = vmul.f32 %v510, 0.015625
      %v512 = vadd.f32 %v509, %v511
      %513 = vst [vmem:[#allocation8] sm:$0x1] %v512
    $region33: #{tpu_custom_call.1} parent=1 // pred_fallthru
      _
    // Predicated region
    $region34: #{tpu_custom_call.1} parent=1 // pred_check
      _
    $region35: #{tpu_custom_call.1} parent=1 // pred_check_branch
      %515 = sbr.rel (0) target = $region37
    $region36: #{tpu_custom_call.1} parent=1 // pred_region
      %s516 = sadd.s32 0, 0
      %s518 = ssub.s32 16, 16
      %519 = vsyncadd [#allocation5], %s518
      %s520 = smul.addr %s516, 16
      %s521 = scalar_lea.hbm %s4, %s520
      %s523 = sshll.u32 [#allocation8], 4
      %s524 = int_to_ptr.vmem [resolvable:$true] %s523
      %526 = dma.vmem_to_hbm [thread:$0]  %s524, 16, %s521, [#allocation5]
    $region37: #{tpu_custom_call.1} parent=1 // pred_fallthru
      _
    // Predicated region
    $region38: #{tpu_custom_call.1} parent=1 // pred_check
      _
    $region39: #{tpu_custom_call.1} parent=1 // pred_check_branch
      %528 = sbr.rel (0) target = $region41
    $region40: #{tpu_custom_call.1} parent=1 // pred_region
      %529 = dma.done [#allocation5], 16
    $region41: #{tpu_custom_call.1} parent=1 // pred_fallthru
      _
    %530 = vsyncpa [#allocation4], 1
    %531 = vsyncpa [#allocation7], 1
    %532 = vsyncpa [#allocation5], 1

</llo_original>
